<compile_context>
chip_gen: v5e
topology: v5e:2x2
jax: 0.10.0
libtpu: 0.0.40
codegen_flags: <defaults>
</compile_context>

<pallas_src>
import jax
import jax.numpy as jnp
from jax.experimental import pallas as pl
from jax.experimental.pallas import tpu as pltpu


# ----------------------------------------------------------------------------
# Kernel
# ----------------------------------------------------------------------------
def style_mlp_kernel(s_ref, w_ref, b_ref, o_ref):
    # s_ref : (tb, Dp)      packed style rows (P samples per 128-lane row)
    # w_ref : (2, Dp, Dp)   stacked block-diagonal weights [W1^T_pack, W2^T_pack]
    # b_ref : (2, Dp)       stacked lane-tiled biases      [b1_pack,   b2_pack]
    # o_ref : (tb, Dp)      packed output rows
    s = s_ref[...]

    h = jnp.dot(s, w_ref[0], preferred_element_type=jnp.float32) + b_ref[0:1, :]
    h = jnp.maximum(h, 0.0)                                       # ReLU (VPU)
    out = jnp.dot(h, w_ref[1], preferred_element_type=jnp.float32) + b_ref[1:2, :]

    o_ref[...] = out.astype(o_ref.dtype)


# ----------------------------------------------------------------------------
# One-time parameter preparation (do at parameter-load time, NOT per call)
# ----------------------------------------------------------------------------
def _pack_factor(style_dim: int) -> int:
    """How many samples to pack per 128-lane row."""
    if style_dim >= 128 or 128 % style_dim != 0:
        return 1
    return 128 // style_dim


def pack_style_transformer_params(w1, b1, w2, b2):
    """Transpose to (in, out), block-diagonalize for lane packing, tile biases,
    and stack layer-1/layer-2 params into single buffers (2 DMAs instead of 4)."""
    D = w1.shape[0]
    P = _pack_factor(D)
    eye = jnp.eye(P, dtype=w1.dtype)
    w1p = jnp.kron(eye, w1.T)                     # (P*D, P*D) block-diag W1^T
    w2p = jnp.kron(eye, w2.T)                     # (P*D, P*D) block-diag W2^T
    wp = jnp.stack([w1p, w2p])                    # (2, P*D, P*D)
    bp = jnp.stack([jnp.tile(b1, P), jnp.tile(b2, P)])   # (2, P*D)
    return wp, bp


# ----------------------------------------------------------------------------
# Batch-tile selection (packed rows)
# ----------------------------------------------------------------------------
def _pick_row_tile(rows: int) -> int:
    if rows <= 256:
        # Small/medium: grid-step overhead dominates -> single step, whole batch.
        return rows
    if rows <= 2048 and rows % 16 == 0:
        # Medium-large: two balanced tiles so both v7x TensorCores get one big
        # tile each (on v5e/v6e these are just two well-amortized steps).
        return rows // 2
    # Huge batches: large 8-row-multiple tiles to amortize per-step overhead.
    for tb in (1024, 512, 256):
        if rows % tb == 0:
            return tb
    return rows  # fallback: single tile (still tiny vs. VMEM)


# ----------------------------------------------------------------------------
# Forward
# ----------------------------------------------------------------------------
def style_transformer_forward(s, wp, bp):
    """s: (B, D) style vectors.  wp/bp: outputs of pack_style_transformer_params."""
    B, D = s.shape
    Dp = wp.shape[-1]
    P = Dp // D

    # Pad batch to a multiple of the packing factor (rare; P=2 for D=64).
    pad = (-B) % P
    if pad:
        s = jnp.concatenate([s, jnp.zeros((pad, D), s.dtype)], axis=0)
    Bp = B + pad
    rows = Bp // P

    # Free row-major reshape: P consecutive samples share one 128-lane row.
    sp = s.reshape(rows, Dp)

    tb = _pick_row_tile(rows)
    grid = (rows // tb,)

    out_packed = pl.pallas_call(
        style_mlp_kernel,
        out_shape=jax.ShapeDtypeStruct((rows, Dp), s.dtype),
        grid_spec=pltpu.PrefetchScalarGridSpec(
            num_scalar_prefetch=0,
            grid=grid,
            in_specs=[
                pl.BlockSpec((tb, Dp), lambda i: (i, 0)),        # packed style tile
                pl.BlockSpec((2, Dp, Dp), lambda i: (0, 0, 0)),  # resident weights
                pl.BlockSpec((2, Dp), lambda i: (0, 0)),         # resident biases
            ],
            out_specs=pl.BlockSpec((tb, Dp), lambda i: (i, 0)),
        ),
        compiler_params=pltpu.CompilerParams(
            dimension_semantics=("parallel",)),
    )(sp, wp, bp)

    out = out_packed.reshape(Bp, D)   # free reshape back to (B, D)
    if pad:
        out = out[:B]
    return out


def style_transformer_reference(s, w1, b1, w2, b2):
    """Pure-JAX reference mirroring the PyTorch forward."""
    h = jnp.maximum(s @ w1.T + b1, 0.0)
    return h @ w2.T + b2


if __name__ == "__main__":
    STYLE_DIM = 64     # module default
    B = 16

    key = jax.random.PRNGKey(0)
    ks, kw1, kb1, kw2, kb2 = jax.random.split(key, 5)

    s = jax.random.normal(ks, (B, STYLE_DIM), dtype=jnp.float32)
    # nn.Linear(style_dim, style_dim): weight (out, in), bias (out,)
    w1 = jax.random.normal(kw1, (STYLE_DIM, STYLE_DIM), dtype=jnp.float32) * 0.1
    b1 = jax.random.normal(kb1, (STYLE_DIM,), dtype=jnp.float32) * 0.1
    w2 = jax.random.normal(kw2, (STYLE_DIM, STYLE_DIM), dtype=jnp.float32) * 0.1
    b2 = jax.random.normal(kb2, (STYLE_DIM,), dtype=jnp.float32) * 0.1

    # Parameter packing happens once (at "load time"), not per call.
    wp, bp = pack_style_transformer_params(w1, b1, w2, b2)
    wp, bp = jax.block_until_ready((wp, bp))

    out = style_transformer_forward(s, wp, bp)
    out = jax.block_until_ready(out)

    ref = style_transformer_reference(s, w1, b1, w2, b2)
    assert out.shape == (B, STYLE_DIM)
    assert jnp.allclose(out, ref, atol=1e-4, rtol=1e-4)

    print("KERNEL_OK")
</pallas_src>

<mosaic_0001>
module attributes {stable_mosaic.version = 11 : i64} {
  func.func @style_mlp_kernel(%arg0: i32, %arg1: memref<8x128xf32, #tpu.memory_space<vmem>>, %arg2: memref<2x128x128xf32, #tpu.memory_space<vmem>>, %arg3: memref<2x128xf32, #tpu.memory_space<vmem>>, %arg4: memref<8x128xf32, #tpu.memory_space<vmem>>) attributes {dimension_semantics = [#tpu.dimension_semantics<parallel>], iteration_bounds = array<i64: 1>, scalar_prefetch = 0 : i64, scratch_operands = 0 : i64, tpu.core_type = #tpu.core_type<tc>, window_params = [{transform_indices = @transform_0, window_bounds = array<i64: 8, 128>}, {pipeline_mode = #tpu.pipeline_mode<synchronous>, transform_indices = @transform_1, window_bounds = array<i64: 2, 128, 128>}, {pipeline_mode = #tpu.pipeline_mode<synchronous>, transform_indices = @transform_2, window_bounds = array<i64: 2, 128>}, {transform_indices = @transform_3, window_bounds = array<i64: 8, 128>}]} {
    %c0 = arith.constant 0 : index
    %c0_0 = arith.constant 0 : index
    %0 = vector.load %arg1[%c0, %c0_0] : memref<8x128xf32, #tpu.memory_space<vmem>>, vector<8x128xf32>
    %c0_1 = arith.constant 0 : index
    %c0_2 = arith.constant 0 : index
    %c0_3 = arith.constant 0 : index
    %1 = vector.load %arg2[%c0_1, %c0_2, %c0_3] : memref<2x128x128xf32, #tpu.memory_space<vmem>>, vector<1x128x128xf32>
    %2 = vector.shape_cast %1 : vector<1x128x128xf32> to vector<128x128xf32>
    %cst = arith.constant dense<0.000000e+00> : vector<8x128xf32>
    %3 = tpu.matmul %0, %2, %cst {dimension_numbers = #tpu.dot_dimension_numbers<[1], [0], [0], [1], [0, 0, 1, 1], [], []>} : vector<8x128xf32>, vector<128x128xf32>, vector<8x128xf32> -> vector<8x128xf32>
    %c0_4 = arith.constant 0 : index
    %c0_5 = arith.constant 0 : index
    %4 = vector.load %arg3[%c0_4, %c0_5] : memref<2x128xf32, #tpu.memory_space<vmem>>, vector<1x128xf32>
    %5 = vector.broadcast %4 : vector<1x128xf32> to vector<8x128xf32>
    %6 = arith.addf %3, %5 : vector<8x128xf32>
    %cst_6 = arith.constant 0.000000e+00 : f32
    %7 = vector.broadcast %cst_6 : f32 to vector<8x128xf32>
    %8 = arith.maximumf %6, %7 : vector<8x128xf32>
    %c1 = arith.constant 1 : index
    %c0_7 = arith.constant 0 : index
    %c0_8 = arith.constant 0 : index
    %9 = vector.load %arg2[%c1, %c0_7, %c0_8] : memref<2x128x128xf32, #tpu.memory_space<vmem>>, vector<1x128x128xf32>
    %10 = vector.shape_cast %9 : vector<1x128x128xf32> to vector<128x128xf32>
    %cst_9 = arith.constant dense<0.000000e+00> : vector<8x128xf32>
    %11 = tpu.matmul %8, %10, %cst_9 {dimension_numbers = #tpu.dot_dimension_numbers<[1], [0], [0], [1], [0, 0, 1, 1], [], []>} : vector<8x128xf32>, vector<128x128xf32>, vector<8x128xf32> -> vector<8x128xf32>
    %c1_10 = arith.constant 1 : index
    %c0_11 = arith.constant 0 : index
    %12 = vector.load %arg3[%c1_10, %c0_11] : memref<2x128xf32, #tpu.memory_space<vmem>>, vector<1x128xf32>
    %13 = vector.broadcast %12 : vector<1x128xf32> to vector<8x128xf32>
    %14 = arith.addf %11, %13 : vector<8x128xf32>
    %c0_12 = arith.constant 0 : index
    %c0_13 = arith.constant 0 : index
    %15 = vector.load %arg4[%c0_12, %c0_13] : memref<8x128xf32, #tpu.memory_space<vmem>>, vector<8x128xf32>
    tpu.vector_store %arg4[%c0_12, %c0_13], %14 {strides = array<i32>} : memref<8x128xf32, #tpu.memory_space<vmem>>, vector<8x128xf32>,
    return
  }
  func.func @transform_0(%arg0: i32) -> (i32, i32) {
    %c0_i32 = arith.constant 0 : i32
    %c0_i32_0 = arith.constant 0 : i32
    return %arg0, %c0_i32 : i32, i32
  }
  func.func @transform_1(%arg0: i32) -> (i32, i32, i32) {
    %c0_i32 = arith.constant 0 : i32
    %c0_i32_0 = arith.constant 0 : i32
    %c0_i32_1 = arith.constant 0 : i32
    %c0_i32_2 = arith.constant 0 : i32
    return %c0_i32, %c0_i32_0, %c0_i32_1 : i32, i32, i32
  }
  func.func @transform_2(%arg0: i32) -> (i32, i32) {
    %c0_i32 = arith.constant 0 : i32
    %c0_i32_0 = arith.constant 0 : i32
    %c0_i32_1 = arith.constant 0 : i32
    return %c0_i32, %c0_i32_0 : i32, i32
  }
  func.func @transform_3(%arg0: i32) -> (i32, i32) {
    %c0_i32 = arith.constant 0 : i32
    %c0_i32_0 = arith.constant 0 : i32
    return %arg0, %c0_i32 : i32, i32
  }
}

</mosaic_0001>

<llo_original>
// kernel: tpu_custom_call.1
$region0: #{tpu_custom_call.1}
  #allocation0 [shape = 'u32[]', space=smem, size = 0x4, offset = 0x4, fixed_abs, tag = 'smem constant byte address 0x4 - core index']
  #allocation1 [shape = 'u32[72,128]{1,0:T(1,128)}', space=vmem, size = 0x9000, scoped, tag = 'internal scratch']
  %s0 = inlined_call_operand.hbm [shape: f32[8,128], index: 0, kind: input, shape index: {}]
  %s1 = inlined_call_operand.hbm [shape: f32[2,128,128], index: 1, kind: input, shape index: {}]
  %s2 = inlined_call_operand.hbm [shape: f32[2,128], index: 2, kind: input, shape index: {}]
  %s3 = inlined_call_operand.hbm [shape: f32[8,128], index: 3, kind: output, shape index: {}]
  %s4 = sld [smem:[#allocation0]]
  $region34: #{tpu_custom_call.1} parent=0
    _
  %s6 = ssub.s32 1, %s4
  %s7 = scalar_select 0, %s6, %s4
  $region1: #{tpu_custom_call.1} parent=0
    #allocation2 [shape = 'u8[4096]{0}', space=vmem, size = 0x1000, scoped, tag = 'input window, operand 0, single buffered']
    #allocation3 [shape = 's32[1]{0}', space=sflag, size = 0x4, scoped, tag = 'scoped memory for tpu_custom_call.1']
    #allocation4 [shape = 's32[1]{0}', space=sflag, size = 0x4, scoped, tag = 'scoped memory for tpu_custom_call.1']
    #allocation5 [shape = 'u8[131072]{0}', space=vmem, size = 0x20000, scoped, tag = 'input window, operand 1, single buffered']
    #allocation6 [shape = 's32[1]{0}', space=sflag, size = 0x4, scoped, tag = 'scoped memory for tpu_custom_call.1']
    #allocation7 [shape = 'u8[1024]{0}', space=vmem, size = 0x400, scoped, tag = 'input window, operand 2, single buffered']
    #allocation8 [shape = 'u8[4096]{0}', space=vmem, size = 0x1000, scoped, tag = 'output window, operand 0, single buffered']
    %8 = vsyncpa [#allocation3], 0
    %9 = vsyncpa [#allocation6], 0
    %10 = vsyncpa [#allocation4], 0
    // Predicated region
    $region2: #{tpu_custom_call.1} parent=1 // pred_check
      _
    $region3: #{tpu_custom_call.1} parent=1 // pred_check_branch
      %12 = sbr.rel (0) target = $region5
    $region4: #{tpu_custom_call.1} parent=1 // pred_region
      %14 = vsyncadd [#allocation3], 0
      %s16 = sshll.u32 %s0, 4
      %s17 = int_to_ptr.hbm [resolvable:$true] %s16
      %s18 = sshll.u32 [#allocation2], 4
      %s19 = int_to_ptr.vmem [resolvable:$true] %s18
      %21 = dma.hbm_to_vmem [thread:$0]  %s17, 128, %s19, [#allocation3]
    $region5: #{tpu_custom_call.1} parent=1 // pred_fallthru
      _
    // Predicated region
    $region6: #{tpu_custom_call.1} parent=1 // pred_check
      _
    $region7: #{tpu_custom_call.1} parent=1 // pred_check_branch
      %23 = sbr.rel (0) target = $region9
    $region8: #{tpu_custom_call.1} parent=1 // pred_region
      %25 = vsyncadd [#allocation6], 0
      %s26 = sshll.u32 %s1, 4
      %s27 = int_to_ptr.hbm [resolvable:$true] %s26
      %s28 = sshll.u32 [#allocation5], 4
      %s29 = int_to_ptr.vmem [resolvable:$true] %s28
      %34 = dma.hbm_to_vmem [thread:$0]  %s27, 4096, %s29, [#allocation6], 128, 128, 8
    $region9: #{tpu_custom_call.1} parent=1 // pred_fallthru
      _
    // Predicated region
    $region10: #{tpu_custom_call.1} parent=1 // pred_check
      _
    $region11: #{tpu_custom_call.1} parent=1 // pred_check_branch
      %36 = sbr.rel (0) target = $region13
    $region12: #{tpu_custom_call.1} parent=1 // pred_region
      %38 = vsyncadd [#allocation6], 0
      %s40 = sshll.u32 %s2, 4
      %s41 = int_to_ptr.hbm [resolvable:$true] %s40
      %s42 = sshll.u32 [#allocation7], 4
      %s43 = int_to_ptr.vmem [resolvable:$true] %s42
      %45 = dma.hbm_to_vmem [thread:$0]  %s41, 32, %s43, [#allocation6]
    $region13: #{tpu_custom_call.1} parent=1 // pred_fallthru
      _
    // Predicated region
    $region14: #{tpu_custom_call.1} parent=1 // pred_check
      _
    $region15: #{tpu_custom_call.1} parent=1 // pred_check_branch
      %47 = sbr.rel (0) target = $region17
    $region16: #{tpu_custom_call.1} parent=1 // pred_region
      %49 = dma.done [#allocation3], 128
    $region17: #{tpu_custom_call.1} parent=1 // pred_fallthru
      _
    // Predicated region
    $region18: #{tpu_custom_call.1} parent=1 // pred_check
      _
    $region19: #{tpu_custom_call.1} parent=1 // pred_check_branch
      %51 = sbr.rel (0) target = $region21
    $region20: #{tpu_custom_call.1} parent=1 // pred_region
      %53 = dma.done [#allocation6], 4096
    $region21: #{tpu_custom_call.1} parent=1 // pred_fallthru
      _
    // Predicated region
    $region22: #{tpu_custom_call.1} parent=1 // pred_check
      _
    $region23: #{tpu_custom_call.1} parent=1 // pred_check_branch
      %55 = sbr.rel (0) target = $region25
    $region24: #{tpu_custom_call.1} parent=1 // pred_region
      %57 = dma.done [#allocation6], 32
    $region25: #{tpu_custom_call.1} parent=1 // pred_fallthru
      _
    %v58 = vld [vmem:[#allocation2] sm:$0xff]
    %v59 = vld [vmem:[#allocation5] sm:$0xff]
    %v60 = vld [vmem:[#allocation5 + $0x8] sm:$0xff]
    %v61 = vld [vmem:[#allocation5 + $0x10] sm:$0xff]
    %v62 = vld [vmem:[#allocation5 + $0x18] sm:$0xff]
    %v63 = vld [vmem:[#allocation5 + $0x20] sm:$0xff]
    %v64 = vld [vmem:[#allocation5 + $0x28] sm:$0xff]
    %v65 = vld [vmem:[#allocation5 + $0x30] sm:$0xff]
    %v66 = vld [vmem:[#allocation5 + $0x38] sm:$0xff]
    %v67 = vld [vmem:[#allocation5 + $0x40] sm:$0xff]
    %v68 = vld [vmem:[#allocation5 + $0x48] sm:$0xff]
    %v69 = vld [vmem:[#allocation5 + $0x50] sm:$0xff]
    %v70 = vld [vmem:[#allocation5 + $0x58] sm:$0xff]
    %v71 = vld [vmem:[#allocation5 + $0x60] sm:$0xff]
    %v72 = vld [vmem:[#allocation5 + $0x68] sm:$0xff]
    %v73 = vld [vmem:[#allocation5 + $0x70] sm:$0xff]
    %v74 = vld [vmem:[#allocation5 + $0x78] sm:$0xff]
    %v75 = vld [vmem:[#allocation7] sm:$0x1]
    %v76 = vperm.slane %v75, 0
    %77 = vmatpush.msra.mxu0 %v74
    %78 = vmatpush.msra.mxu0 %v73
    %79 = vmatpush.msra.mxu0 %v72
    %80 = vmatpush.msra.mxu0 %v71
    %81 = vmatpush.msra.mxu0 %v70
    %82 = vmatpush.msra.mxu0 %v69
    %83 = vmatpush.msra.mxu0 %v68
    %84 = vmatpush.msra.mxu0 %v67
    %85 = vmatpush.msra.mxu0 %v66
    %86 = vmatpush.msra.mxu0 %v65
    %87 = vmatpush.msra.mxu0 %v64
    %88 = vmatpush.msra.mxu0 %v63
    %89 = vmatpush.msra.mxu0 %v62
    %90 = vmatpush.msra.mxu0 %v61
    %91 = vmatpush.msra.mxu0 %v60
    %92 = vmatpush.msra.mxu0 %v59
    %93 = vmatmul.f32.gmra.mxu0 %v58
    %v94 = vpop.f32.mrf.mxu0
    %v95 = vadd.f32 %v76, %v94
    %96 = vdwg.mxu0
    %v97 = vmax.f32 %v95, 0.0
    %s98 = scalar_lea.vmem [#allocation5], 128
    %v99 = vld [vmem:[%s98] sm:$0xff]
    %v100 = vld [vmem:[%s98 + $0x8] sm:$0xff]
    %v101 = vld [vmem:[%s98 + $0x10] sm:$0xff]
    %v102 = vld [vmem:[%s98 + $0x18] sm:$0xff]
    %v103 = vld [vmem:[%s98 + $0x20] sm:$0xff]
    %v104 = vld [vmem:[%s98 + $0x28] sm:$0xff]
    %v105 = vld [vmem:[%s98 + $0x30] sm:$0xff]
    %v106 = vld [vmem:[%s98 + $0x38] sm:$0xff]
    %v107 = vld [vmem:[%s98 + $0x40] sm:$0xff]
    %v108 = vld [vmem:[%s98 + $0x48] sm:$0xff]
    %v109 = vld [vmem:[%s98 + $0x50] sm:$0xff]
    %v110 = vld [vmem:[%s98 + $0x58] sm:$0xff]
    %v111 = vld [vmem:[%s98 + $0x60] sm:$0xff]
    %v112 = vld [vmem:[%s98 + $0x68] sm:$0xff]
    %v113 = vld [vmem:[%s98 + $0x70] sm:$0xff]
    %v114 = vld [vmem:[%s98 + $0x78] sm:$0xff]
    %v115 = vld [vmem:[#allocation7 + $0x1] sm:$0x1]
    %v116 = vperm.slane %v115, 0
    %117 = vmatpush.msra.mxu0 %v114
    %118 = vmatpush.msra.mxu0 %v113
    %119 = vmatpush.msra.mxu0 %v112
    %120 = vmatpush.msra.mxu0 %v111
    %121 = vmatpush.msra.mxu0 %v110
    %122 = vmatpush.msra.mxu0 %v109
    %123 = vmatpush.msra.mxu0 %v108
    %124 = vmatpush.msra.mxu0 %v107
    %125 = vmatpush.msra.mxu0 %v106
    %126 = vmatpush.msra.mxu0 %v105
    %127 = vmatpush.msra.mxu0 %v104
    %128 = vmatpush.msra.mxu0 %v103
    %129 = vmatpush.msra.mxu0 %v102
    %130 = vmatpush.msra.mxu0 %v101
    %131 = vmatpush.msra.mxu0 %v100
    %132 = vmatpush.msra.mxu0 %v99
    %133 = vmatmul.f32.gmra.mxu0 %v97
    %v134 = vpop.f32.mrf.mxu0
    %v135 = vadd.f32 %v116, %v134
    %136 = vdwg.mxu0
    %137 = vst [vmem:[#allocation8] sm:$0xff] %v135
    // Predicated region
    $region26: #{tpu_custom_call.1} parent=1 // pred_check
      _
    $region27: #{tpu_custom_call.1} parent=1 // pred_check_branch
      %139 = sbr.rel (0) target = $region29
    $region28: #{tpu_custom_call.1} parent=1 // pred_region
      %141 = vsyncadd [#allocation4], 0
      %s143 = sshll.u32 [#allocation8], 4
      %s144 = int_to_ptr.vmem [resolvable:$true] %s143
      %s145 = sshll.u32 %s3, 4
      %s146 = int_to_ptr.hbm [resolvable:$true] %s145
      %148 = dma.vmem_to_hbm [thread:$0]  %s144, 128, %s146, [#allocation4]
    $region29: #{tpu_custom_call.1} parent=1 // pred_fallthru
      _
    // Predicated region
    $region30: #{tpu_custom_call.1} parent=1 // pred_check
      _
    $region31: #{tpu_custom_call.1} parent=1 // pred_check_branch
      %150 = sbr.rel (0) target = $region33
    $region32: #{tpu_custom_call.1} parent=1 // pred_region
      %152 = dma.done [#allocation4], 128
    $region33: #{tpu_custom_call.1} parent=1 // pred_fallthru
      _
    %153 = vsyncpa [#allocation3], 1
    %154 = vsyncpa [#allocation6], 1
    %155 = vsyncpa [#allocation4], 1

</llo_original>
